<compile_context>
chip_gen: v7x
topology: tpu7x:2x2x1
jax: 0.10.0
libtpu: 0.0.40
codegen_flags: <defaults>
</compile_context>

<pallas_src>
import functools

import jax
import jax.numpy as jnp
from jax.experimental import pallas as pl
from jax.experimental.pallas import tpu as pltpu

C_IN = 384
C_MID = 64
C_OUT = 1
UPSAMPLE = 8
LANE_CHUNK = 256  # epilogue streaming chunk (multiple of 128)


def _cdiv(a, b):
    return -(-a // b)


def _vit_head_kernel(x_ref, w1t_ref, b1_ref, w2_ref, b2_ref, o_ref):
    # x_ref:   (C_IN, TM)    activation tile, pixels on lanes (bf16 or f32)
    # w1t_ref: (C_MID, C_IN) conv1 weight, already bf16 (pre-cast in wrapper)
    # b1_ref:  (C_MID, 1)    f32
    # w2_ref:  (C_MID, 1)    f32 conv2 weight as a column
    # b2_ref:  (1, 1)        f32
    # o_ref:   (1, TM)       lane-dense output tile
    w1t = w1t_ref[...]
    b1 = b1_ref[...]
    w2 = w2_ref[...]
    b2 = b2_ref[...]

    tm = o_ref.shape[-1]
    # Stream over static lane chunks: keeps the (C_MID, chunk) f32 matmul
    # result small (~16 vregs) so large tm never triggers vreg-spill blowups.
    off = 0
    while off < tm:
        size = min(LANE_CHUNK, tm - off)          # static; multiple of 128
        sl = pl.ds(off, size)
        xs = x_ref[:, sl].astype(jnp.bfloat16)    # no-op when x is already bf16
        h = jnp.dot(w1t, xs, preferred_element_type=jnp.float32)  # (C_MID, size)
        h = jnp.maximum(h + b1, 0.0)
        # Second 1x1 conv (single output channel): VPU multiply + sublane
        # reduce instead of a wasteful 1-column MXU matmul -> lane-dense row.
        o_ref[:, sl] = (jnp.sum(h * w2, axis=0, keepdims=True) + b2
                        ).astype(o_ref.dtype)
        off += size


def _head_matmul(x3, w1t_bf16, b1, w2, b2, *, tm_target=2048, min_grid_steps=4):
    """x3: [B, C_IN, Npix] -> [B, 1, Npix] (dtype follows x3) via Pallas."""
    B, C, npix = x3.shape
    assert C == C_IN
    assert tm_target % 128 == 0
    out_dtype = x3.dtype

    # Lane-dense tile: as large as tm_target, never larger than the
    # 128-rounded pixel count, and small enough that B * num_tiles gives a
    # v7x chip (2 TensorCores) at least `min_grid_steps` parallel grid steps.
    tm = min(tm_target, _cdiv(npix, 128) * 128)
    while tm > 128 and B * _cdiv(npix, tm) < min_grid_steps:
        tm = _cdiv(tm // 2, 128) * 128
    num_tiles = _cdiv(npix, tm)  # partial last block: Pallas masks the writes
    grid = (B, num_tiles)

    x_itemsize = jnp.dtype(x3.dtype).itemsize
    o_itemsize = jnp.dtype(out_dtype).itemsize
    cost = pl.CostEstimate(
        flops=2 * B * npix * C_MID * (C_IN + 1),
        transcendentals=0,
        bytes_accessed=(B * C_IN * npix * x_itemsize          # activations
                        + B * C_OUT * npix * o_itemsize       # low-res output
                        + C_MID * C_IN * 2 + (2 * C_MID + 1) * 4),  # weights
    )

    return pl.pallas_call(
        _vit_head_kernel,
        out_shape=jax.ShapeDtypeStruct((B, C_OUT, npix), out_dtype),
        grid_spec=pltpu.PrefetchScalarGridSpec(
            num_scalar_prefetch=0,
            grid=grid,
            in_specs=[
                pl.BlockSpec((None, C_IN, tm), lambda b, i: (b, 0, i)),
                pl.BlockSpec((C_MID, C_IN), lambda b, i: (0, 0)),
                pl.BlockSpec((C_MID, 1), lambda b, i: (0, 0)),
                pl.BlockSpec((C_MID, 1), lambda b, i: (0, 0)),
                pl.BlockSpec((1, 1), lambda b, i: (0, 0)),
            ],
            out_specs=pl.BlockSpec((None, C_OUT, tm), lambda b, i: (b, 0, i)),
        ),
        compiler_params=pltpu.CompilerParams(
            dimension_semantics=("parallel", "parallel")),
        cost_estimate=cost,
    )(x3, w1t_bf16, b1, w2, b2)


@functools.partial(jax.jit, static_argnames=("upsample_scale",))
def vit_head_forward(x_nchw, w1t, b1, w2, b2, upsample_scale=UPSAMPLE):
    """Matches ViTHead.forward. x: [B, 384, H, W] -> [B, 1, 8H, 8W] (x dtype)."""
    B, C, H, W = x_nchw.shape
    assert C == C_IN
    # NCHW -> [B, C_IN, H*W] is a free (contiguous) reshape; no transpose pass.
    x3 = x_nchw.reshape(B, C_IN, H * W)
    # Pre-cast the tiny conv1 weight to bf16 once (not per grid step).
    y = _head_matmul(x3, w1t.astype(jnp.bfloat16), b1, w2, b2)   # [B, 1, H*W]
    # nn.Upsample(scale_factor=8, mode='nearest') == pure replication; single
    # materialization via broadcast_to + reshape (no double jnp.repeat).
    s = upsample_scale
    y = y.reshape(B, C_OUT, H, 1, W, 1)
    y = jnp.broadcast_to(y, (B, C_OUT, H, s, W, s)).reshape(
        B, C_OUT, H * s, W * s)
    return y


def init_params(key):
    """Deterministic parameter init matching nn.Conv2d shapes (1x1 kernels)."""
    k1, k2, k3, k4 = jax.random.split(key, 4)
    # conv1.weight [64, 384, 1, 1] -> stored as [64, 384] (same [out, in] order)
    w1t = jax.random.normal(k1, (C_MID, C_IN), jnp.float32) * 0.02
    b1 = jax.random.normal(k2, (C_MID, 1), jnp.float32) * 0.01
    # conv2.weight [1, 64, 1, 1] -> stored as [64, 1] column
    w2 = jax.random.normal(k3, (C_MID, C_OUT), jnp.float32) * 0.02
    b2 = jax.random.normal(k4, (1, C_OUT), jnp.float32) * 0.01
    return w1t, b1, w2, b2


if __name__ == "__main__":
    key = jax.random.PRNGKey(0)
    kx, kx2, kp = jax.random.split(key, 3)
    w1t, b1, w2, b2 = init_params(kp)

    def reference(x_in):
        # Plain-JAX f32 reference of the same math (kernel uses bf16 operands
        # on the first matmul with f32 accumulation -> tolerance loosened).
        xf = x_in.astype(jnp.float32)
        Bx, _, Hx, Wx = x_in.shape
        x_flat = jnp.transpose(xf, (0, 2, 3, 1)).reshape(-1, C_IN)
        h_ref = jnp.maximum(x_flat @ w1t.T + b1.reshape(1, -1), 0.0)
        y_ref = (h_ref @ w2 + b2.reshape(1, 1)).reshape(Bx, Hx, Wx, C_OUT)
        y_ref = y_ref.transpose(0, 3, 1, 2)
        return jnp.repeat(jnp.repeat(y_ref, UPSAMPLE, axis=2), UPSAMPLE, axis=3)

    # Main path: bf16 activations straight from a bf16 ViT backbone.
    B, H, W = 2, 16, 16
    x = jax.random.normal(kx, (B, C_IN, H, W), jnp.float32).astype(jnp.bfloat16)
    out = jax.block_until_ready(vit_head_forward(x, w1t, b1, w2, b2))
    assert out.shape == (B, C_OUT, H * UPSAMPLE, W * UPSAMPLE), out.shape
    err = float(jnp.max(jnp.abs(out.astype(jnp.float32) - reference(x))))
    assert err < 2e-2, err

    # Ragged H*W (partial last block, no pad copy) with the f32-input fallback.
    B2, H2, W2 = 1, 10, 12
    x2 = jax.random.normal(kx2, (B2, C_IN, H2, W2), jnp.float32)
    out2 = jax.block_until_ready(vit_head_forward(x2, w1t, b1, w2, b2))
    assert out2.shape == (B2, C_OUT, H2 * UPSAMPLE, W2 * UPSAMPLE), out2.shape
    err2 = float(jnp.max(jnp.abs(out2.astype(jnp.float32) - reference(x2))))
    assert err2 < 2e-2, err2

    print("KERNEL_OK")
</pallas_src>

<mosaic_0001>
module attributes {stable_mosaic.version = 11 : i64} {
  func.func @_vit_head_kernel(%arg0: i32, %arg1: i32, %arg2: memref<1x384x128xbf16, #tpu.memory_space<vmem>>, %arg3: memref<64x384xbf16, #tpu.memory_space<vmem>>, %arg4: memref<64x1xf32, #tpu.memory_space<vmem>>, %arg5: memref<64x1xf32, #tpu.memory_space<vmem>>, %arg6: memref<1x1xf32, #tpu.memory_space<vmem>>, %arg7: memref<1x1x128xbf16, #tpu.memory_space<vmem>>) attributes {dimension_semantics = [#tpu.dimension_semantics<parallel>, #tpu.dimension_semantics<parallel>], iteration_bounds = array<i64: 2, 2>, scalar_prefetch = 0 : i64, scratch_operands = 0 : i64, tpu.core_type = #tpu.core_type<tc>, window_params = [{transform_indices = @transform_0, window_bounds = array<i64: 1, 384, 128>}, {pipeline_mode = #tpu.pipeline_mode<synchronous>, transform_indices = @transform_1, window_bounds = array<i64: 64, 384>}, {pipeline_mode = #tpu.pipeline_mode<synchronous>, transform_indices = @transform_2, window_bounds = array<i64: 64, 1>}, {pipeline_mode = #tpu.pipeline_mode<synchronous>, transform_indices = @transform_3, window_bounds = array<i64: 64, 1>}, {pipeline_mode = #tpu.pipeline_mode<synchronous>, transform_indices = @transform_4, window_bounds = array<i64: 1, 1>}, {transform_indices = @transform_5, window_bounds = array<i64: 1, 1, 128>}]} {
    %c0 = arith.constant 0 : index
    %c0_0 = arith.constant 0 : index
    %0 = vector.load %arg3[%c0, %c0_0] : memref<64x384xbf16, #tpu.memory_space<vmem>>, vector<64x384xbf16>
    %c0_1 = arith.constant 0 : index
    %c0_2 = arith.constant 0 : index
    %1 = vector.load %arg4[%c0_1, %c0_2] : memref<64x1xf32, #tpu.memory_space<vmem>>, vector<64x1xf32>
    %c0_3 = arith.constant 0 : index
    %c0_4 = arith.constant 0 : index
    %2 = vector.load %arg5[%c0_3, %c0_4] : memref<64x1xf32, #tpu.memory_space<vmem>>, vector<64x1xf32>
    %c0_5 = arith.constant 0 : index
    %c0_6 = arith.constant 0 : index
    %3 = vector.load %arg6[%c0_5, %c0_6] : memref<1x1xf32, #tpu.memory_space<vmem>>, vector<1x1xf32>
    %c0_7 = arith.constant 0 : index
    %c0_8 = arith.constant 0 : index
    %c0_9 = arith.constant 0 : index
    %4 = vector.load %arg2[%c0_7, %c0_8, %c0_9] : memref<1x384x128xbf16, #tpu.memory_space<vmem>>, vector<1x384x128xbf16>
    %5 = vector.shape_cast %4 : vector<1x384x128xbf16> to vector<384x128xbf16>
    %cst = arith.constant dense<0.000000e+00> : vector<64x128xf32>
    %6 = tpu.matmul %0, %5, %cst {dimension_numbers = #tpu.dot_dimension_numbers<[1], [0], [0], [1], [0, 0, 1, 1], [], []>} : vector<64x384xbf16>, vector<384x128xbf16>, vector<64x128xf32> -> vector<64x128xf32>
    %7 = vector.broadcast %1 : vector<64x1xf32> to vector<64x128xf32>
    %8 = arith.addf %6, %7 : vector<64x128xf32>
    %cst_10 = arith.constant 0.000000e+00 : f32
    %9 = vector.broadcast %cst_10 : f32 to vector<64x128xf32>
    %10 = arith.maximumf %8, %9 : vector<64x128xf32>
    %11 = vector.broadcast %2 : vector<64x1xf32> to vector<64x128xf32>
    %12 = arith.mulf %10, %11 : vector<64x128xf32>
    %cst_11 = arith.constant dense<0.000000e+00> : vector<128xf32>
    %13 = vector.multi_reduction <add>, %12, %cst_11 [0] : vector<64x128xf32> to vector<128xf32>
    %14 = vector.shape_cast %13 : vector<128xf32> to vector<1x128xf32>
    %15 = vector.broadcast %3 : vector<1x1xf32> to vector<1x128xf32>
    %16 = arith.addf %14, %15 : vector<1x128xf32>
    %17 = arith.truncf %16 : vector<1x128xf32> to vector<1x128xbf16>
    %c0_12 = arith.constant 0 : index
    %c0_13 = arith.constant 0 : index
    %c0_14 = arith.constant 0 : index
    %18 = vector.load %arg7[%c0_12, %c0_13, %c0_14] : memref<1x1x128xbf16, #tpu.memory_space<vmem>>, vector<1x1x128xbf16>
    %19 = vector.shape_cast %18 : vector<1x1x128xbf16> to vector<1x128xbf16>
    %20 = vector.shape_cast %17 : vector<1x128xbf16> to vector<1x1x128xbf16>
    tpu.vector_store %arg7[%c0_12, %c0_13, %c0_14], %20 {strides = array<i32>} : memref<1x1x128xbf16, #tpu.memory_space<vmem>>, vector<1x1x128xbf16>,
    return
  }
  func.func @transform_0(%arg0: i32, %arg1: i32) -> (i32, i32, i32) {
    %c0_i32 = arith.constant 0 : i32
    %c0_i32_0 = arith.constant 0 : i32
    return %arg0, %c0_i32, %arg1 : i32, i32, i32
  }
  func.func @transform_1(%arg0: i32, %arg1: i32) -> (i32, i32) {
    %c0_i32 = arith.constant 0 : i32
    %c0_i32_0 = arith.constant 0 : i32
    %c0_i32_1 = arith.constant 0 : i32
    return %c0_i32, %c0_i32_0 : i32, i32
  }
  func.func @transform_2(%arg0: i32, %arg1: i32) -> (i32, i32) {
    %c0_i32 = arith.constant 0 : i32
    %c0_i32_0 = arith.constant 0 : i32
    %c0_i32_1 = arith.constant 0 : i32
    return %c0_i32, %c0_i32_0 : i32, i32
  }
  func.func @transform_3(%arg0: i32, %arg1: i32) -> (i32, i32) {
    %c0_i32 = arith.constant 0 : i32
    %c0_i32_0 = arith.constant 0 : i32
    %c0_i32_1 = arith.constant 0 : i32
    return %c0_i32, %c0_i32_0 : i32, i32
  }
  func.func @transform_4(%arg0: i32, %arg1: i32) -> (i32, i32) {
    %c0_i32 = arith.constant 0 : i32
    %c0_i32_0 = arith.constant 0 : i32
    %c0_i32_1 = arith.constant 0 : i32
    return %c0_i32, %c0_i32_0 : i32, i32
  }
  func.func @transform_5(%arg0: i32, %arg1: i32) -> (i32, i32, i32) {
    %c0_i32 = arith.constant 0 : i32
    %c0_i32_0 = arith.constant 0 : i32
    return %arg0, %c0_i32, %arg1 : i32, i32, i32
  }
}

</mosaic_0001>

<llo_original>
// kernel: vit_head_forward.1
$region0: #{vit_head_forward.1}
  #allocation0 [shape = 'u32[]', space=smem, size = 0x4, offset = 0x4, fixed_abs, tag = 'smem constant byte address 0x4 - core index']
  #allocation1 [shape = 'u32[144,128]{1,0:T(1,128)}', space=vmem, size = 0x12000, scoped, tag = 'internal scratch']
  #allocation2 [shape = 'f32[1,1]{1,0:T(1,128)S(1)}', space=vmem, size = 0x200, scoped, tag = 'scoped memory for vit_head_forward.1']
  %s0 = inlined_call_operand.vmem [shape: bf16[2,384,256], index: 0, kind: input, shape index: {}]
  %s1 = inlined_call_operand.vmem [shape: bf16[64,384], index: 1, kind: input, shape index: {}]
  %s2 = inlined_call_operand.vmem [shape: f32[64,1], index: 2, kind: input, shape index: {}]
  %s3 = inlined_call_operand.vmem [shape: f32[64,1], index: 3, kind: input, shape index: {}]
  %s4 = inlined_call_operand.<no memory space> [shape: f32[1,1], index: 4, kind: input, shape index: {}]
  %s5 = inlined_call_operand.vmem [shape: bf16[2,1,256], index: 5, kind: output, shape index: {}]
  %s6 = sld [smem:[#allocation0]]
  $region94: #{vit_head_forward.1} parent=0
    _
  %s8 = ssub.s32 1, %s6
  %s9 = scalar_select 0, %s8, %s6
  %v10 = vstv %s4
  %11 = vst [vmem:[#allocation2] sm:$0x1] %v10
  $region1: #{vit_head_forward.1} parent=0
    #allocation3 [shape = 'u8[196608]{0}', space=vmem, size = 0x30000, scoped, tag = 'input window, operand 0']
    loop: start=0, step=1, limit=6
    $region2: #{vit_head_forward.1} parent=1 // loop_pre_header
      _
    $region3: #{vit_head_forward.1} parent=1 // loop_header
      %s13 = sphi 0, %s17
      %p14 = scmp.ge.s32.totalorder %s13, 6
      %s20 = sphi 0, %s32
      %s21 = sphi 0, %s28
      %s22 = sphi 0, %s20
      %s23 = sphi 0, %s21
      %s24 = sphi 0, %s22
      %s25 = sphi 0, %s23
      %s37 = sphi 0, %s39
      %s40 = sphi 0, %s37
      %s41 = sphi 0, %s40
      %s57 = sphi 0, %s41
      %s61 = sphi 0, %s61
      %s63 = sphi 0, %s61
      %s64 = sphi 0, %s63
      %s78 = sphi 0, %s64
      %s82 = sphi 0, %s82
      %s84 = sphi 0, %s82
      %s85 = sphi 0, %s84
      %s99 = sphi 0, %s85
      %s103 = sphi 0, %s103
      %s105 = sphi 0, %s103
      %s106 = sphi 0, %s105
      %s120 = sphi 0, %s106
      %s124 = sphi 0, %s124
      %s126 = sphi 0, %s124
      %s127 = sphi 0, %s126
      %s141 = sphi 0, %s127
      %s149 = sphi 0, %s151
      %s152 = sphi 0, %s149
      %s153 = sphi 0, %s152
      %s169 = sphi 0, %s153
    $region4: #{vit_head_forward.1} parent=1 // loop_header_branch
      %16 = sbr.rel (%p14) target = $region8
    $region5: #{vit_head_forward.1} parent=1 // loop_body
      %s18 = ssub.s32 %s13, 1
      %s19 = ssub.s32 %s13, 2
      %s26 = sadd.s32 1, %s21
      %p27 = scmp.ge.s32.totalorder %s26, 2
      %s28 = scalar_select %p27, 0, %s26
      %s29 = sadd.s32 1, %s20
      %s30 = scalar_select %p27, %s29, %s20
      %p31 = scmp.ge.s32.totalorder %s30, 2
      %s32 = scalar_select %p31, 0, %s30
      %s33 = ssub.s32 %s20, %s32
      %s34 = ssub.s32 %s21, %s28
      %s35 = sor.u32 %s33, %s34
      %p36 = scmp.eq.s32.totalorder %s35, 0
      %s38 = sadd.s32 %s37, 1
      %s39 = scalar_select %p36, %s37, %s38
      %p42 = pneg %p36
      %p43 = scmp.eq.s32.totalorder %s13, 3
      %p44 = por %p42, %p43
      %p45 = scmp.ne.s32.totalorder %s37, %s40
      %p46 = scmp.eq.s32.totalorder %s13, 0
      %p47 = por %p45, %p46
      %p48 = scmp.ne.s32.totalorder %s37, %s40
      %p49 = scmp.eq.s32.totalorder %s18, 3
      %p50 = por %p48, %p49
      %p51 = scmp.ne.s32.totalorder %s40, %s41
      %p52 = scmp.eq.s32.totalorder %s18, 0
      %p53 = por %p51, %p52
      %p54 = scmp.ne.s32.totalorder %s40, %s41
      %p55 = scmp.eq.s32.totalorder %s19, 3
      %p56 = por %p54, %p55
      %p58 = scmp.ne.s32.totalorder %s41, %s57
      %p59 = scmp.eq.s32.totalorder %s19, 0
      %p60 = por %p58, %p59
      %s62 = sadd.s32 %s61, 1
      %p65 = scmp.eq.s32.totalorder %s13, 3
      %p66 = scmp.ne.s32.totalorder %s61, %s63
      %p67 = scmp.eq.s32.totalorder %s13, 0
      %p68 = por %p66, %p67
      %p69 = scmp.ne.s32.totalorder %s61, %s63
      %p70 = scmp.eq.s32.totalorder %s18, 3
      %p71 = por %p69, %p70
      %p72 = scmp.ne.s32.totalorder %s63, %s64
      %p73 = scmp.eq.s32.totalorder %s18, 0
      %p74 = por %p72, %p73
      %p75 = scmp.ne.s32.totalorder %s63, %s64
      %p76 = scmp.eq.s32.totalorder %s19, 3
      %p77 = por %p75, %p76
      %p79 = scmp.ne.s32.totalorder %s64, %s78
      %p80 = scmp.eq.s32.totalorder %s19, 0
      %p81 = por %p79, %p80
      %s83 = sadd.s32 %s82, 1
      %p86 = scmp.eq.s32.totalorder %s13, 3
      %p87 = scmp.ne.s32.totalorder %s82, %s84
      %p88 = scmp.eq.s32.totalorder %s13, 0
      %p89 = por %p87, %p88
      %p90 = scmp.ne.s32.totalorder %s82, %s84
      %p91 = scmp.eq.s32.totalorder %s18, 3
      %p92 = por %p90, %p91
      %p93 = scmp.ne.s32.totalorder %s84, %s85
      %p94 = scmp.eq.s32.totalorder %s18, 0
      %p95 = por %p93, %p94
      %p96 = scmp.ne.s32.totalorder %s84, %s85
      %p97 = scmp.eq.s32.totalorder %s19, 3
      %p98 = por %p96, %p97
      %p100 = scmp.ne.s32.totalorder %s85, %s99
      %p101 = scmp.eq.s32.totalorder %s19, 0
      %p102 = por %p100, %p101
      %s104 = sadd.s32 %s103, 1
      %p107 = scmp.eq.s32.totalorder %s13, 3
      %p108 = scmp.ne.s32.totalorder %s103, %s105
      %p109 = scmp.eq.s32.totalorder %s13, 0
      %p110 = por %p108, %p109
      %p111 = scmp.ne.s32.totalorder %s103, %s105
      %p112 = scmp.eq.s32.totalorder %s18, 3
      %p113 = por %p111, %p112
      %p114 = scmp.ne.s32.totalorder %s105, %s106
      %p115 = scmp.eq.s32.totalorder %s18, 0
      %p116 = por %p114, %p115
      %p117 = scmp.ne.s32.totalorder %s105, %s106
      %p118 = scmp.eq.s32.totalorder %s19, 3
      %p119 = por %p117, %p118
      %p121 = scmp.ne.s32.totalorder %s106, %s120
      %p122 = scmp.eq.s32.totalorder %s19, 0
      %p123 = por %p121, %p122
      %s125 = sadd.s32 %s124, 1
      %p128 = scmp.eq.s32.totalorder %s13, 3
      %p129 = scmp.ne.s32.totalorder %s124, %s126
      %p130 = scmp.eq.s32.totalorder %s13, 0
      %p131 = por %p129, %p130
      %p132 = scmp.ne.s32.totalorder %s124, %s126
      %p133 = scmp.eq.s32.totalorder %s18, 3
      %p134 = por %p132, %p133
      %p135 = scmp.ne.s32.totalorder %s126, %s127
      %p136 = scmp.eq.s32.totalorder %s18, 0
      %p137 = por %p135, %p136
      %p138 = scmp.ne.s32.totalorder %s126, %s127
      %p139 = scmp.eq.s32.totalorder %s19, 3
      %p140 = por %p138, %p139
      %p142 = scmp.ne.s32.totalorder %s127, %s141
      %p143 = scmp.eq.s32.totalorder %s19, 0
      %p144 = por %p142, %p143
      %s145 = ssub.s32 %s20, %s32
      %s146 = ssub.s32 %s21, %s28
      %s147 = sor.u32 %s145, %s146
      %p148 = scmp.eq.s32.totalorder %s147, 0
      %s150 = sadd.s32 %s149, 1
      %s151 = scalar_select %p148, %s149, %s150
      %p154 = pneg %p148
      %p155 = scmp.eq.s32.totalorder %s13, 3
      %p156 = por %p154, %p155
      %p157 = scmp.ne.s32.totalorder %s149, %s152
      %p158 = scmp.eq.s32.totalorder %s13, 0
      %p159 = por %p157, %p158
      %p160 = scmp.ne.s32.totalorder %s149, %s152
      %p161 = scmp.eq.s32.totalorder %s18, 3
      %p162 = por %p160, %p161
      %p163 = scmp.ne.s32.totalorder %s152, %s153
      %p164 = scmp.eq.s32.totalorder %s18, 0
      %p165 = por %p163, %p164
      %p166 = scmp.ne.s32.totalorder %s152, %s153
      %p167 = scmp.eq.s32.totalorder %s19, 3
      %p168 = por %p166, %p167
      %p170 = scmp.ne.s32.totalorder %s153, %s169
      %p171 = scmp.eq.s32.totalorder %s19, 0
      %p172 = por %p170, %p171
      %p173 = scmp.le.s32.totalorder 1, %s13
      %p174 = scmp.lt.s32.totalorder %s13, 5
      %p175 = pnand %p173, %p174
      %p176 = pneg %p175
      // Predicated region
      $region9: #{vit_head_forward.1} parent=5 // pred_check
        _
      $region10: #{vit_head_forward.1} parent=5 // pred_check_branch
        %178 = sbr.rel (%p175) target = $region12
      $region11: #{vit_head_forward.1} parent=5 // pred_region
        %s179 = ssub.s32 %s13, 1
        // Predicated region
        $region13: #{vit_head_forward.1} parent=11 // pred_check
          %p180 = pneg %p74
        $region14: #{vit_head_forward.1} parent=11 // pred_check_branch
          %182 = sbr.rel (%p180) target = $region16
        $region15: #{vit_head_forward.1} parent=11 // pred_region
          _
        $region16: #{vit_head_forward.1} parent=11 // pred_fallthru
          _
        // Predicated region
        $region17: #{vit_head_forward.1} parent=11 // pred_check
          %p183 = pneg %p95
        $region18: #{vit_head_forward.1} parent=11 // pred_check_branch
          %185 = sbr.rel (%p183) target = $region20
        $region19: #{vit_head_forward.1} parent=11 // pred_region
          _
        $region20: #{vit_head_forward.1} parent=11 // pred_fallthru
          _
        // Predicated region
        $region21: #{vit_head_forward.1} parent=11 // pred_check
          %p186 = pneg %p116
        $region22: #{vit_head_forward.1} parent=11 // pred_check_branch
          %188 = sbr.rel (%p186) target = $region24
        $region23: #{vit_head_forward.1} parent=11 // pred_region
          _
        $region24: #{vit_head_forward.1} parent=11 // pred_fallthru
          _
        // Predicated region
        $region25: #{vit_head_forward.1} parent=11 // pred_check
          %p189 = pneg %p137
        $region26: #{vit_head_forward.1} parent=11 // pred_check_branch
          %191 = sbr.rel (%p189) target = $region28
        $region27: #{vit_head_forward.1} parent=11 // pred_region
          _
        $region28: #{vit_head_forward.1} parent=11 // pred_fallthru
          _
      $region12: #{vit_head_forward.1} parent=5 // pred_fallthru
        _
      %p192 = scmp.lt.s32.totalorder %s13, 4
      // Predicated region
      $region29: #{vit_head_forward.1} parent=5 // pred_check
        %p193 = pneg %p192
      $region30: #{vit_head_forward.1} parent=5 // pred_check_branch
        %195 = sbr.rel (%p193) target = $region32
      $region31: #{vit_head_forward.1} parent=5 // pred_region
        // Predicated region
        $region33: #{vit_head_forward.1} parent=31 // pred_check
          %p196 = pneg %p47
        $region34: #{vit_head_forward.1} parent=31 // pred_check_branch
          %198 = sbr.rel (%p196) target = $region36
        $region35: #{vit_head_forward.1} parent=31 // pred_region
          %s199 = sand.u32 %s37, 1
          %s200 = sand.u32 %s37, 1
          %s201 = smul.addr %s200, 192
          %s202 = scalar_lea.vmem [#allocation3], %s201
          %s203 = smul.addr %s20, 96
          %s204 = sadd.s32 %s21, %s203
          %s205 = smul.addr %s204, 4
          %s206 = scalar_lea.vmem %s0, %s205
          // Predicated region
          $region37: #{vit_head_forward.1} parent=35 // pred_check
            _
          $region38: #{vit_head_forward.1} parent=35 // pred_check_branch
            %208 = sbr.rel (0) target = $region40
          $region39: #{vit_head_forward.1} parent=35 // pred_region
            // Predicated region
            $region41: #{vit_head_forward.1} parent=39 // pred_check
              _
            $region42: #{vit_head_forward.1} parent=39 // pred_check_branch
              %210 = sbr.rel target = $region44
            $region43: #{vit_head_forward.1} parent=39 // pred_region
              // Predicated region
              $region56: #{vit_head_forward.1} parent=43 // pred_check
                _
              $region57: #{vit_head_forward.1} parent=43 // pred_check_branch
                %319 = sbr.rel (0) target = $region59
              $region58: #{vit_head_forward.1} parent=43 // pred_region
                loop: start=0, step=1, limit=1
                $region60: #{vit_head_forward.1} parent=58 // loop_pre_header
                  _
                $region61: #{vit_head_forward.1} parent=58 // loop_header
                  %s321 = sphi 0, %s325
                  %p322 = scmp.ge.s32.totalorder %s321, 1
                  %s326 = sphi %s206, %s206
                  %s327 = sphi %s202, %s202
                $region62: #{vit_head_forward.1} parent=58 // loop_header_branch
                  %324 = sbr.rel (%p322) target = $region66
                $region63: #{vit_head_forward.1} parent=58 // loop_body
                  _
                $region64: #{vit_head_forward.1} parent=58 // loop_footer
                  %s325 = sadd.s32 1, %s321
                $region65: #{vit_head_forward.1} parent=58 // loop_footer_branch
                  %320 = sbr.rel target = $region61
                $region66: #{vit_head_forward.1} parent=58 // loop_exit
                  _
                loop: start=0, step=1, limit=1
                $region67: #{vit_head_forward.1} parent=58 // loop_pre_header
                  _
                $region68: #{vit_head_forward.1} parent=58 // loop_header
                  %s330 = sphi 0, %s334
                  %p331 = scmp.ge.s32.totalorder %s330, 1
                  %s335 = sphi %s206, %s206
                  %s336 = sphi %s202, %s202
                $region69: #{vit_head_forward.1} parent=58 // loop_header_branch
                  %333 = sbr.rel (%p331) target = $region73
                $region70: #{vit_head_forward.1} parent=58 // loop_body
                  %v337 = vld [vmem:[%s335] sm:$0xf]
                  %338 = vst [vmem:[%s336] sm:$0xf] %v337
                  %v339 = vld [vmem:[%s335 + $0x8] sm:$0xf]
                  %340 = vst [vmem:[%s336 + $0x4] sm:$0xf] %v339
                  %v341 = vld [vmem:[%s335 + $0x10] sm:$0xf]
                  %342 = vst [vmem:[%s336 + $0x8] sm:$0xf] %v341
                  %v343 = vld [vmem:[%s335 + $0x18] sm:$0xf]
                  %344 = vst [vmem:[%s336 + $0xc] sm:$0xf] %v343
                  %v345 = vld [vmem:[%s335 + $0x20] sm:$0xf]
                  %346 = vst [vmem:[%s336 + $0x10] sm:$0xf] %v345
                  %v347 = vld [vmem:[%s335 + $0x28] sm:$0xf]
                  %348 = vst [vmem:[%s336 + $0x14] sm:$0xf] %v347
                  %v349 = vld [vmem:[%s335 + $0x30] sm:$0xf]
                  %350 = vst [vmem:[%s336 + $0x18] sm:$0xf] %v349
                  %v351 = vld [vmem:[%s335 + $0x38] sm:$0xf]
                  %352 = vst [vmem:[%s336 + $0x1c] sm:$0xf] %v351
                  %v353 = vld [vmem:[%s335 + $0x40] sm:$0xf]
                  %354 = vst [vmem:[%s336 + $0x20] sm:$0xf] %v353
                  %v355 = vld [vmem:[%s335 + $0x48] sm:$0xf]
                  %356 = vst [vmem:[%s336 + $0x24] sm:$0xf] %v355
                  %v357 = vld [vmem:[%s335 + $0x50] sm:$0xf]
                  %358 = vst [vmem:[%s336 + $0x28] sm:$0xf] %v357
                  %v359 = vld [vmem:[%s335 + $0x58] sm:$0xf]
                  %360 = vst [vmem:[%s336 + $0x2c] sm:$0xf] %v359
                  %v361 = vld [vmem:[%s335 + $0x60] sm:$0xf]
                  %362 = vst [vmem:[%s336 + $0x30] sm:$0xf] %v361
                  %v363 = vld [vmem:[%s335 + $0x68] sm:$0xf]
                  %364 = vst [vmem:[%s336 + $0x34] sm:$0xf] %v363
                  %v365 = vld [vmem:[%s335 + $0x70] sm:$0xf]
                  %366 = vst [vmem:[%s336 + $0x38] sm:$0xf] %v365
                  %v367 = vld [vmem:[%s335 + $0x78] sm:$0xf]
                  %368 = vst [vmem:[%s336 + $0x3c] sm:$0xf] %v367
                  %v369 = vld [vmem:[%s335 + $0x80] sm:$0xf]
                  %370 = vst [vmem:[%s336 + $0x40] sm:$0xf] %v369
                  %v371 = vld [vmem:[%s335 + $0x88] sm:$0xf]
                  %372 = vst [vmem:[%s336 + $0x44] sm:$0xf] %v371
                  %v373 = vld [vmem:[%s335 + $0x90] sm:$0xf]
                  %374 = vst [vmem:[%s336 + $0x48] sm:$0xf] %v373
                  %v375 = vld [vmem:[%s335 + $0x98] sm:$0xf]
                  %376 = vst [vmem:[%s336 + $0x4c] sm:$0xf] %v375
                  %v377 = vld [vmem:[%s335 + $0xa0] sm:$0xf]
                  %378 = vst [vmem:[%s336 + $0x50] sm:$0xf] %v377
                  %v379 = vld [vmem:[%s335 + $0xa8] sm:$0xf]
                  %380 = vst [vmem:[%s336 + $0x54] sm:$0xf] %v379
                  %v381 = vld [vmem:[%s335 + $0xb0] sm:$0xf]
                  %382 = vst [vmem:[%s336 + $0x58] sm:$0xf] %v381
                  %v383 = vld [vmem:[%s335 + $0xb8] sm:$0xf]
                  %384 = vst [vmem:[%s336 + $0x5c] sm:$0xf] %v383
                  %v385 = vld [vmem:[%s335 + $0xc0] sm:$0xf]
                  %386 = vst [vmem:[%s336 + $0x60] sm:$0xf] %v385
                  %v387 = vld [vmem:[%s335 + $0xc8] sm:$0xf]
                  %388 = vst [vmem:[%s336 + $0x64] sm:$0xf] %v387
                  %v389 = vld [vmem:[%s335 + $0xd0] sm:$0xf]
                  %390 = vst [vmem:[%s336 + $0x68] sm:$0xf] %v389
                  %v391 = vld [vmem:[%s335 + $0xd8] sm:$0xf]
                  %392 = vst [vmem:[%s336 + $0x6c] sm:$0xf] %v391
                  %v393 = vld [vmem:[%s335 + $0xe0] sm:$0xf]
                  %394 = vst [vmem:[%s336 + $0x70] sm:$0xf] %v393
                  %v395 = vld [vmem:[%s335 + $0xe8] sm:$0xf]
                  %396 = vst [vmem:[%s336 + $0x74] sm:$0xf] %v395
                  %v397 = vld [vmem:[%s335 + $0xf0] sm:$0xf]
                  %398 = vst [vmem:[%s336 + $0x78] sm:$0xf] %v397
                  %v399 = vld [vmem:[%s335 + $0xf8] sm:$0xf]
                  %400 = vst [vmem:[%s336 + $0x7c] sm:$0xf] %v399
                  %v401 = vld [vmem:[%s335 + $0x100] sm:$0xf]
                  %402 = vst [vmem:[%s336 + $0x80] sm:$0xf] %v401
                  %v403 = vld [vmem:[%s335 + $0x108] sm:$0xf]
                  %404 = vst [vmem:[%s336 + $0x84] sm:$0xf] %v403
                  %v405 = vld [vmem:[%s335 + $0x110] sm:$0xf]
                  %406 = vst [vmem:[%s336 + $0x88] sm:$0xf] %v405
                  %v407 = vld [vmem:[%s335 + $0x118] sm:$0xf]
                  %408 = vst [vmem:[%s336 + $0x8c] sm:$0xf] %v407
                  %v409 = vld [vmem:[%s335 + $0x120] sm:$0xf]
                  %410 = vst [vmem:[%s336 + $0x90] sm:$0xf] %v409
                  %v411 = vld [vmem:[%s335 + $0x128] sm:$0xf]
                  %412 = vst [vmem:[%s336 + $0x94] sm:$0xf] %v411
                  %v413 = vld [vmem:[%s335 + $0x130] sm:$0xf]
                  %414 = vst [vmem:[%s336 + $0x98] sm:$0xf] %v413
                  %v415 = vld [vmem:[%s335 + $0x138] sm:$0xf]
                  %416 = vst [vmem:[%s336 + $0x9c] sm:$0xf] %v415
                  %v417 = vld [vmem:[%s335 + $0x140] sm:$0xf]
                  %418 = vst [vmem:[%s336 + $0xa0] sm:$0xf] %v417
                  %v419 = vld [vmem:[%s335 + $0x148] sm:$0xf]
                  %420 = vst [vmem:[%s336 + $0xa4] sm:$0xf] %v419
                  %v421 = vld [vmem:[%s335 + $0x150] sm:$0xf]
                  %422 = vst [vmem:[%s336 + $0xa8] sm:$0xf] %v421
                  %v423 = vld [vmem:[%s335 + $0x158] sm:$0xf]
                  %424 = vst [vmem:[%s336 + $0xac] sm:$0xf] %v423
                  %v425 = vld [vmem:[%s335 + $0x160] sm:$0xf]
                  %426 = vst [vmem:[%s336 + $0xb0] sm:$0xf] %v425
                  %v427 = vld [vmem:[%s335 + $0x168] sm:$0xf]
                  %428 = vst [vmem:[%s336 + $0xb4] sm:$0xf] %v427
                  %v429 = vld [vmem:[%s335 + $0x170] sm:$0xf]
                  %430 = vst [vmem:[%s336 + $0xb8] sm:$0xf] %v429
                  %v431 = vld [vmem:[%s335 + $0x178] sm:$0xf]
                  %432 = vst [vmem:[%s336 + $0xbc] sm:$0xf] %v431
                $region71: #{vit_head_forward.1} parent=58 // loop_footer
                  %s334 = sadd.s32 1, %s330
                $region72: #{vit_head_forward.1} parent=58 // loop_footer_branch
                  %329 = sbr.rel target = $region68
                $region73: #{vit_head_forward.1} parent=58 // loop_exit
                  _
              $region59: #{vit_head_forward.1} parent=43 // pred_fallthru
                _
            $region44: #{vit_head_forward.1} parent=39 // pred_fallthru
              _
            // Predicated region
            $region45: #{vit_head_forward.1} parent=39 // pred_check
              _
            $region46: #{vit_head_forward.1} parent=39 // pred_check_branch
              %212 = sbr.rel (0) target = $region48
            $region47: #{vit_head_forward.1} parent=39 // pred_region
              loop: start=0, step=1, limit=1
              $region49: #{vit_head_forward.1} parent=47 // loop_pre_header
                _
              $region50: #{vit_head_forward.1} parent=47 // loop_header
                %s215 = sphi 0, %s219
                %p216 = scmp.ge.s32.totalorder %s215, 1
                %s220 = sphi %s206, %s206
                %s221 = sphi %s202, %s202
              $region51: #{vit_head_forward.1} parent=47 // loop_header_branch
                %218 = sbr.rel (%p216) target = $region55
              $region52: #{vit_head_forward.1} parent=47 // loop_body
                %v222 = vld [vmem:[%s220] sm:$0xf]
                %223 = vst [vmem:[%s221] sm:$0xf] %v222
                %v224 = vld [vmem:[%s220 + $0x8] sm:$0xf]
                %225 = vst [vmem:[%s221 + $0x4] sm:$0xf] %v224
                %v226 = vld [vmem:[%s220 + $0x10] sm:$0xf]
                %227 = vst [vmem:[%s221 + $0x8] sm:$0xf] %v226
                %v228 = vld [vmem:[%s220 + $0x18] sm:$0xf]
                %229 = vst [vmem:[%s221 + $0xc] sm:$0xf] %v228
                %v230 = vld [vmem:[%s220 + $0x20] sm:$0xf]
                %231 = vst [vmem:[%s221 + $0x10] sm:$0xf] %v230
                %v232 = vld [vmem:[%s220 + $0x28] sm:$0xf]
                %233 = vst [vmem:[%s221 + $0x14] sm:$0xf] %v232
                %v234 = vld [vmem:[%s220 + $0x30] sm:$0xf]
                %235 = vst [vmem:[%s221 + $0x18] sm:$0xf] %v234
                %v236 = vld [vmem:[%s220 + $0x38] sm:$0xf]
                %237 = vst [vmem:[%s221 + $0x1c] sm:$0xf] %v236
                %v238 = vld [vmem:[%s220 + $0x40] sm:$0xf]
                %239 = vst [vmem:[%s221 + $0x20] sm:$0xf] %v238
                %v240 = vld [vmem:[%s220 + $0x48] sm:$0xf]
                %241 = vst [vmem:[%s221 + $0x24] sm:$0xf] %v240
                %v242 = vld [vmem:[%s220 + $0x50] sm:$0xf]
                %243 = vst [vmem:[%s221 + $0x28] sm:$0xf] %v242
                %v244 = vld [vmem:[%s220 + $0x58] sm:$0xf]
                %245 = vst [vmem:[%s221 + $0x2c] sm:$0xf] %v244
                %v246 = vld [vmem:[%s220 + $0x60] sm:$0xf]
                %247 = vst [vmem:[%s221 + $0x30] sm:$0xf] %v246
                %v248 = vld [vmem:[%s220 + $0x68] sm:$0xf]
                %249 = vst [vmem:[%s221 + $0x34] sm:$0xf] %v248
                %v250 = vld [vmem:[%s220 + $0x70] sm:$0xf]
                %251 = vst [vmem:[%s221 + $0x38] sm:$0xf] %v250
                %v252 = vld [vmem:[%s220 + $0x78] sm:$0xf]
                %253 = vst [vmem:[%s221 + $0x3c] sm:$0xf] %v252
                %v254 = vld [vmem:[%s220 + $0x80] sm:$0xf]
                %255 = vst [vmem:[%s221 + $0x40] sm:$0xf] %v254
                %v256 = vld [vmem:[%s220 + $0x88] sm:$0xf]
                %257 = vst [vmem:[%s221 + $0x44] sm:$0xf] %v256
                %v258 = vld [vmem:[%s220 + $0x90] sm:$0xf]
                %259 = vst [vmem:[%s221 + $0x48] sm:$0xf] %v258
                %v260 = vld [vmem:[%s220 + $0x98] sm:$0xf]
                %261 = vst [vmem:[%s221 + $0x4c] sm:$0xf] %v260
                %v262 = vld [vmem:[%s220 + $0xa0] sm:$0xf]
                %263 = vst [vmem:[%s221 + $0x50] sm:$0xf] %v262
                %v264 = vld [vmem:[%s220 + $0xa8] sm:$0xf]
                %265 = vst [vmem:[%s221 + $0x54] sm:$0xf] %v264
                %v266 = vld [vmem:[%s220 + $0xb0] sm:$0xf]
                %267 = vst [vmem:[%s221 + $0x58] sm:$0xf] %v266
                %v268 = vld [vmem:[%s220 + $0xb8] sm:$0xf]
                %269 = vst [vmem:[%s221 + $0x5c] sm:$0xf] %v268
                %v270 = vld [vmem:[%s220 + $0xc0] sm:$0xf]
                %271 = vst [vmem:[%s221 + $0x60] sm:$0xf] %v270
                %v272 = vld [vmem:[%s220 + $0xc8] sm:$0xf]
                %273 = vst [vmem:[%s221 + $0x64] sm:$0xf] %v272
                %v274 = vld [vmem:[%s220 + $0xd0] sm:$0xf]
                %275 = vst [vmem:[%s221 + $0x68] sm:$0xf] %v274
                %v276 = vld [vmem:[%s220 + $0xd8] sm:$0xf]
                %277 = vst [vmem:[%s221 + $0x6c] sm:$0xf] %v276
                %v278 = vld [vmem:[%s220 + $0xe0] sm:$0xf]
                %279 = vst [vmem:[%s221 + $0x70] sm:$0xf] %v278
                %v280 = vld [vmem:[%s220 + $0xe8] sm:$0xf]
                %281 = vst [vmem:[%s221 + $0x74] sm:$0xf] %v280
                %v282 = vld [vmem:[%s220 + $0xf0] sm:$0xf]
                %283 = vst [vmem:[%s221 + $0x78] sm:$0xf] %v282
                %v284 = vld [vmem:[%s220 + $0xf8] sm:$0xf]
                %285 = vst [vmem:[%s221 + $0x7c] sm:$0xf] %v284
                %v286 = vld [vmem:[%s220 + $0x100] sm:$0xf]
                %287 = vst [vmem:[%s221 + $0x80] sm:$0xf] %v286
                %v288 = vld [vmem:[%s220 + $0x108] sm:$0xf]
                %289 = vst [vmem:[%s221 + $0x84] sm:$0xf] %v288
                %v290 = vld [vmem:[%s220 + $0x110] sm:$0xf]
                %291 = vst [vmem:[%s221 + $0x88] sm:$0xf] %v290
                %v292 = vld [vmem:[%s220 + $0x118] sm:$0xf]
                %293 = vst [vmem:[%s221 + $0x8c] sm:$0xf] %v292
                %v294 = vld [vmem:[%s220 + $0x120] sm:$0xf]
                %295 = vst [vmem:[%s221 + $0x90] sm:$0xf] %v294
                %v296 = vld [vmem:[%s220 + $0x128] sm:$0xf]
                %297 = vst [vmem:[%s221 + $0x94] sm:$0xf] %v296
                %v298 = vld [vmem:[%s220 + $0x130] sm:$0xf]
                %299 = vst [vmem:[%s221 + $0x98] sm:$0xf] %v298
                %v300 = vld [vmem:[%s220 + $0x138] sm:$0xf]
                %301 = vst [vmem:[%s221 + $0x9c] sm:$0xf] %v300
                %v302 = vld [vmem:[%s220 + $0x140] sm:$0xf]
                %303 = vst [vmem:[%s221 + $0xa0] sm:$0xf] %v302
                %v304 = vld [vmem:[%s220 + $0x148] sm:$0xf]
                %305 = vst [vmem:[%s221 + $0xa4] sm:$0xf] %v304
                %v306 = vld [vmem:[%s220 + $0x150] sm:$0xf]
                %307 = vst [vmem:[%s221 + $0xa8] sm:$0xf] %v306
                %v308 = vld [vmem:[%s220 + $0x158] sm:$0xf]
                %309 = vst [vmem:[%s221 + $0xac] sm:$0xf] %v308
                %v310 = vld [vmem:[%s220 + $0x160] sm:$0xf]
                %311 = vst [vmem:[%s221 + $0xb0] sm:$0xf] %v310
                %v312 = vld [vmem:[%s220 + $0x168] sm:$0xf]
                %313 = vst [vmem:[%s221 + $0xb4] sm:$0xf] %v312
                %v314 = vld [vmem:[%s220 + $0x170] sm:$0xf]
                %315 = vst [vmem:[%s221 + $0xb8] sm:$0xf] %v314
                %v316 = vld [vmem:[%s220 + $0x178] sm:$0xf]
                %317 = vst [vmem:[%s221 + $0xbc] sm:$0xf] %v316
              $region53: #{vit_head_forward.1} parent=47 // loop_footer
                %s219 = sadd.s32 1, %s215
              $region54: #{vit_head_forward.1} parent=47 // loop_footer_branch
                %214 = sbr.rel target = $region50
              $region55: #{vit_head_forward.1} parent=47 // loop_exit
                _
            $region48: #{vit_head_forward.1} parent=39 // pred_fallthru
              _
          $region40: #{vit_head_forward.1} parent=35 // pred_fallthru
            _
          %433 = vnop
        $region36: #{vit_head_forward.1} parent=31 // pred_fallthru
          _
      $region32: #{vit_head_forward.1} parent=5 // pred_fallthru
        _
      %p434 = scmp.le.s32.totalorder 1, %s13
      %p435 = scmp.lt.s32.totalorder %s13, 5
      %p436 = pnand %p434, %p435
      %p437 = pneg %p436
      // Predicated region
      $region74: #{vit_head_forward.1} parent=5 // pred_check
        _
      $region75: #{vit_head_forward.1} parent=5 // pred_check_branch
        %439 = sbr.rel (%p436) target = $region77
      $region76: #{vit_head_forward.1} parent=5 // pred_region
        %s440 = ssub.s32 %s13, 1
        %s441 = sand.u32 %s40, 1
        %s442 = sand.u32 %s40, 1
        %s443 = smul.addr %s442, 192
        %s444 = scalar_lea.vmem [#allocation3], %s443
        // Predicated region
        $region78: #{vit_head_forward.1} parent=76 // pred_check
          %p445 = pneg %p53
        $region79: #{vit_head_forward.1} parent=76 // pred_check_branch
          %447 = sbr.rel (%p445) target = $region81
        $region80: #{vit_head_forward.1} parent=76 // pred_region
          _
        $region81: #{vit_head_forward.1} parent=76 // pred_fallthru
          _
        %s448 = sand.u32 %s40, 1
        %s449 = sand.u32 %s40, 1
        %s450 = smul.addr %s449, 192
        %s451 = scalar_lea.vmem [#allocation3], %s450
        %p452 = pneg %p53
        %p453 = pneg %p50
        %p454 = pneg %p74
        %p455 = pneg %p71
        %p456 = pneg %p95
        %p457 = pneg %p92
        %p458 = pneg %p116
        %p459 = pneg %p113
        %p460 = pneg %p137
        %p461 = pneg %p134
        %p462 = pneg %p165
        %p463 = pneg %p162
        %p464 = scmp.lt.s32.totalorder %s22, 1
        %s465 = scalar_select %p464, %s22, 1
        %p466 = scmp.lt.s32.totalorder %s23, 1
        %s467 = scalar_select %p466, %s23, 1
        %s468 = smul.addr %s465, 2
        %s469 = sadd.s32 %s467, %s468
        %s470 = scalar_lea.vmem %s5, %s469
        %p471 = scmp.lt.s32.totalorder %s22, 1
        %s472 = scalar_select %p471, %s22, 1
        %p473 = scmp.lt.s32.totalorder %s23, 1
        %s474 = scalar_select %p473, %s23, 1
        %s475 = smul.addr %s472, 2
        %s476 = sadd.s32 %s474, %s475
        %s477 = scalar_lea.vmem %s5, %s476
        %v479 = vld [vmem:[%s1] sm:$0xff]
        %v480 = vld [vmem:[%s1 + $0x8] sm:$0xf]
        %v481 = vld [vmem:[%s1 + $0xc] sm:$0xff]
        %v482 = vld [vmem:[%s1 + $0x14] sm:$0xf]
        %v483 = vld [vmem:[%s1 + $0x18] sm:$0xff]
        %v484 = vld [vmem:[%s1 + $0x20] sm:$0xf]
        %v485 = vld [vmem:[%s1 + $0x24] sm:$0xff]
        %v486 = vld [vmem:[%s1 + $0x2c] sm:$0xf]
        %v487 = vld [vmem:[%s1 + $0x30] sm:$0xff]
        %v488 = vld [vmem:[%s1 + $0x38] sm:$0xf]
        %v489 = vld [vmem:[%s1 + $0x3c] sm:$0xff]
        %v490 = vld [vmem:[%s1 + $0x44] sm:$0xf]
        %v491 = vld [vmem:[%s1 + $0x48] sm:$0xff]
        %v492 = vld [vmem:[%s1 + $0x50] sm:$0xf]
        %v493 = vld [vmem:[%s1 + $0x54] sm:$0xff]
        %v494 = vld [vmem:[%s1 + $0x5c] sm:$0xf]
        %v495 = vld [vmem:[%s2] sm:$0xff]
        %v496 = vld [vmem:[%s2 + $0x8] sm:$0xff]
        %v497 = vld [vmem:[%s2 + $0x10] sm:$0xff]
        %v498 = vld [vmem:[%s2 + $0x18] sm:$0xff]
        %v499 = vld [vmem:[%s2 + $0x20] sm:$0xff]
        %v500 = vld [vmem:[%s2 + $0x28] sm:$0xff]
        %v501 = vld [vmem:[%s2 + $0x30] sm:$0xff]
        %v502 = vld [vmem:[%s2 + $0x38] sm:$0xff]
        %v503 = vld [vmem:[%s3] sm:$0xff]
        %v504 = vld [vmem:[%s3 + $0x8] sm:$0xff]
        %v505 = vld [vmem:[%s3 + $0x10] sm:$0xff]
        %v506 = vld [vmem:[%s3 + $0x18] sm:$0xff]
        %v507 = vld [vmem:[%s3 + $0x20] sm:$0xff]
        %v508 = vld [vmem:[%s3 + $0x28] sm:$0xff]
        %v509 = vld [vmem:[%s3 + $0x30] sm:$0xff]
        %v510 = vld [vmem:[%s3 + $0x38] sm:$0xff]
        %v511 = vld [vmem:[#allocation2] sm:$0x1]
        %v512 = vld [vmem:[%s444] sm:$0xf]
        %v513 = vld [vmem:[%s444 + $0x4] sm:$0xf]
        %v514 = vld [vmem:[%s444 + $0x8] sm:$0xf]
        %v515 = vld [vmem:[%s444 + $0xc] sm:$0xf]
        %v516 = vld [vmem:[%s444 + $0x10] sm:$0xf]
        %v517 = vld [vmem:[%s444 + $0x14] sm:$0xf]
        %v518 = vld [vmem:[%s444 + $0x18] sm:$0xf]
        %v519 = vld [vmem:[%s444 + $0x1c] sm:$0xf]
        %v520 = vld [vmem:[%s444 + $0x20] sm:$0xf]
        %v521 = vld [vmem:[%s444 + $0x24] sm:$0xf]
        %v522 = vld [vmem:[%s444 + $0x28] sm:$0xf]
        %v523 = vld [vmem:[%s444 + $0x2c] sm:$0xf]
        %v524 = vld [vmem:[%s444 + $0x30] sm:$0xf]
        %v525 = vld [vmem:[%s444 + $0x34] sm:$0xf]
        %v526 = vld [vmem:[%s444 + $0x38] sm:$0xf]
        %v527 = vld [vmem:[%s444 + $0x3c] sm:$0xf]
        %v528 = vld [vmem:[%s444 + $0x40] sm:$0xf]
        %v529 = vld [vmem:[%s444 + $0x44] sm:$0xf]
        %v530 = vld [vmem:[%s444 + $0x48] sm:$0xf]
        %v531 = vld [vmem:[%s444 + $0x4c] sm:$0xf]
        %v532 = vld [vmem:[%s444 + $0x50] sm:$0xf]
        %v533 = vld [vmem:[%s444 + $0x54] sm:$0xf]
        %v534 = vld [vmem:[%s444 + $0x58] sm:$0xf]
        %v535 = vld [vmem:[%s444 + $0x5c] sm:$0xf]
        %v536 = vld [vmem:[%s444 + $0x60] sm:$0xf]
        %v537 = vld [vmem:[%s444 + $0x64] sm:$0xf]
        %v538 = vld [vmem:[%s444 + $0x68] sm:$0xf]
        %v539 = vld [vmem:[%s444 + $0x6c] sm:$0xf]
        %v540 = vld [vmem:[%s444 + $0x70] sm:$0xf]
        %v541 = vld [vmem:[%s444 + $0x74] sm:$0xf]
        %v542 = vld [vmem:[%s444 + $0x78] sm:$0xf]
        %v543 = vld [vmem:[%s444 + $0x7c] sm:$0xf]
        %v544 = vld [vmem:[%s444 + $0x80] sm:$0xf]
        %v545 = vld [vmem:[%s444 + $0x84] sm:$0xf]
        %v546 = vld [vmem:[%s444 + $0x88] sm:$0xf]
        %v547 = vld [vmem:[%s444 + $0x8c] sm:$0xf]
        %v548 = vld [vmem:[%s444 + $0x90] sm:$0xf]
        %v549 = vld [vmem:[%s444 + $0x94] sm:$0xf]
        %v550 = vld [vmem:[%s444 + $0x98] sm:$0xf]
        %v551 = vld [vmem:[%s444 + $0x9c] sm:$0xf]
        %v552 = vld [vmem:[%s444 + $0xa0] sm:$0xf]
        %v553 = vld [vmem:[%s444 + $0xa4] sm:$0xf]
        %v554 = vld [vmem:[%s444 + $0xa8] sm:$0xf]
        %v555 = vld [vmem:[%s444 + $0xac] sm:$0xf]
        %v556 = vld [vmem:[%s444 + $0xb0] sm:$0xf]
        %v557 = vld [vmem:[%s444 + $0xb4] sm:$0xf]
        %v558 = vld [vmem:[%s444 + $0xb8] sm:$0xf]
        %v559 = vld [vmem:[%s444 + $0xbc] sm:$0xf]
        %561 = vset.pattern.permute.xlu0 0
        %562 = vperm.xlu0 %561, %v495
        %v563 = vpop.permute.xlu0 %562
        %566 = vset.pattern.permute.xlu0 0
        %567 = vperm.xlu0 %566, %v496
        %v568 = vpop.permute.xlu0 %567
        %571 = vset.pattern.permute.xlu0 0
        %572 = vperm.xlu0 %571, %v497
        %v573 = vpop.permute.xlu0 %572
        %576 = vset.pattern.permute.xlu0 0
        %577 = vperm.xlu0 %576, %v498
        %v578 = vpop.permute.xlu0 %577
        %581 = vset.pattern.permute.xlu0 0
        %582 = vperm.xlu0 %581, %v499
        %v583 = vpop.permute.xlu0 %582
        %586 = vset.pattern.permute.xlu0 0
        %587 = vperm.xlu0 %586, %v500
        %v588 = vpop.permute.xlu0 %587
        %591 = vset.pattern.permute.xlu0 0
        %592 = vperm.xlu0 %591, %v501
        %v593 = vpop.permute.xlu0 %592
        %596 = vset.pattern.permute.xlu0 0
        %597 = vperm.xlu0 %596, %v502
        %v598 = vpop.permute.xlu0 %597
        %v616 = vunpack.c.l.b16 %v479
        %v617 = vunpack.c.h.b16 %v479
        %v618 = vunpack.c.l.b16 %v480
        %v619 = vunpack.c.l.b16 %v481
        %v620 = vunpack.c.h.b16 %v481
        %v621 = vunpack.c.l.b16 %v482
        %v622 = vunpack.c.l.b16 %v483
        %v623 = vunpack.c.h.b16 %v483
        %v624 = vunpack.c.l.b16 %v484
        %v625 = vunpack.c.l.b16 %v485
        %v626 = vunpack.c.h.b16 %v485
        %v627 = vunpack.c.l.b16 %v486
        %v628 = vunpack.c.l.b16 %v487
        %v629 = vunpack.c.h.b16 %v487
        %v630 = vunpack.c.l.b16 %v488
        %v631 = vunpack.c.l.b16 %v489
        %v632 = vunpack.c.h.b16 %v489
        %v633 = vunpack.c.l.b16 %v490
        %v634 = vunpack.c.l.b16 %v491
        %v635 = vunpack.c.h.b16 %v491
        %v636 = vunpack.c.l.b16 %v492
        %v637 = vunpack.c.l.b16 %v493
        %v638 = vunpack.c.h.b16 %v493
        %v639 = vunpack.c.l.b16 %v494
        %v640 = vpack.c.b16 %v619, %v616
        %v641 = vpack.c.b16 %v620, %v617
        %v642 = vpack.c.b16 %v621, %v618
        %v643 = vpack.c.b16 %v625, %v622
        %v644 = vpack.c.b16 %v626, %v623
        %v645 = vpack.c.b16 %v627, %v624
        %v646 = vpack.c.b16 %v631, %v628
        %v647 = vpack.c.b16 %v632, %v629
        %v648 = vpack.c.b16 %v633, %v630
        %v649 = vpack.c.b16 %v637, %v634
        %v650 = vpack.c.b16 %v638, %v635
        %v651 = vpack.c.b16 %v639, %v636
        %v712 = vunpack.c.l.b16 %v512
        %v713 = vunpack.c.l.b16 %v513
        %v714 = vunpack.c.l.b16 %v514
        %v715 = vunpack.c.l.b16 %v515
        %v716 = vunpack.c.l.b16 %v516
        %v717 = vunpack.c.l.b16 %v517
        %v718 = vunpack.c.l.b16 %v518
        %v719 = vunpack.c.l.b16 %v519
        %v720 = vunpack.c.l.b16 %v520
        %v721 = vunpack.c.l.b16 %v521
        %v722 = vunpack.c.l.b16 %v522
        %v723 = vunpack.c.l.b16 %v523
        %v724 = vunpack.c.l.b16 %v524
        %v725 = vunpack.c.l.b16 %v525
        %v726 = vunpack.c.l.b16 %v526
        %v727 = vunpack.c.l.b16 %v527
        %v728 = vunpack.c.l.b16 %v528
        %v729 = vunpack.c.l.b16 %v529
        %v730 = vunpack.c.l.b16 %v530
        %v731 = vunpack.c.l.b16 %v531
        %v732 = vunpack.c.l.b16 %v532
        %v733 = vunpack.c.l.b16 %v533
        %v734 = vunpack.c.l.b16 %v534
        %v735 = vunpack.c.l.b16 %v535
        %v736 = vunpack.c.l.b16 %v536
        %v737 = vunpack.c.l.b16 %v537
        %v738 = vunpack.c.l.b16 %v538
        %v739 = vunpack.c.l.b16 %v539
        %v740 = vunpack.c.l.b16 %v540
        %v741 = vunpack.c.l.b16 %v541
        %v742 = vunpack.c.l.b16 %v542
        %v743 = vunpack.c.l.b16 %v543
        %v744 = vunpack.c.l.b16 %v544
        %v745 = vunpack.c.l.b16 %v545
        %v746 = vunpack.c.l.b16 %v546
        %v747 = vunpack.c.l.b16 %v547
        %v748 = vunpack.c.l.b16 %v548
        %v749 = vunpack.c.l.b16 %v549
        %v750 = vunpack.c.l.b16 %v550
        %v751 = vunpack.c.l.b16 %v551
        %v752 = vunpack.c.l.b16 %v552
        %v753 = vunpack.c.l.b16 %v553
        %v754 = vunpack.c.l.b16 %v554
        %v755 = vunpack.c.l.b16 %v555
        %v756 = vunpack.c.l.b16 %v556
        %v757 = vunpack.c.l.b16 %v557
        %v758 = vunpack.c.l.b16 %v558
        %v759 = vunpack.c.l.b16 %v559
        %v760 = vpack.c.b16 %v713, %v712
        %v761 = vpack.c.b16 %v715, %v714
        %v762 = vpack.c.b16 %v717, %v716
        %v763 = vpack.c.b16 %v719, %v718
        %v764 = vpack.c.b16 %v721, %v720
        %v765 = vpack.c.b16 %v723, %v722
        %v766 = vpack.c.b16 %v725, %v724
        %v767 = vpack.c.b16 %v727, %v726
        %v768 = vpack.c.b16 %v729, %v728
        %v769 = vpack.c.b16 %v731, %v730
        %v770 = vpack.c.b16 %v733, %v732
        %v771 = vpack.c.b16 %v735, %v734
        %v772 = vpack.c.b16 %v737, %v736
        %v773 = vpack.c.b16 %v739, %v738
        %v774 = vpack.c.b16 %v741, %v740
        %v775 = vpack.c.b16 %v743, %v742
        %v776 = vpack.c.b16 %v745, %v744
        %v777 = vpack.c.b16 %v747, %v746
        %v778 = vpack.c.b16 %v749, %v748
        %v779 = vpack.c.b16 %v751, %v750
        %v780 = vpack.c.b16 %v753, %v752
        %v781 = vpack.c.b16 %v755, %v754
        %v782 = vpack.c.b16 %v757, %v756
        %v783 = vpack.c.b16 %v759, %v758
        %808 = vmatprep.subr.bf16.mxu0 0
        %809 = vmatpush1.bf16.msra.mxu0 %v760
        %810 = vmatprep.subr.bf16.mxu0 0
        %811 = vmatpush1.bf16.msra.mxu0 %v761
        %812 = vmatprep.subr.bf16.mxu0 0
        %813 = vmatpush1.bf16.msra.mxu0 %v762
        %814 = vmatprep.subr.bf16.mxu0 0
        %815 = vmatpush1.bf16.msra.mxu0 %v763
        %816 = vmatprep.subr.bf16.mxu0 0
        %817 = vmatpush1.bf16.msra.mxu0 %v764
        %818 = vmatprep.subr.bf16.mxu0 0
        %819 = vmatpush1.bf16.msra.mxu0 %v765
        %820 = vmatprep.subr.bf16.mxu0 0
        %821 = vmatpush1.bf16.msra.mxu0 %v766
        %822 = vmatprep.subr.bf16.mxu0 0
        %823 = vmatpush1.bf16.msra.mxu0 %v767
        %824 = vmatprep.subr.bf16.mxu0 0
        %825 = vmatpush1.bf16.msra.mxu0 %v768
        %826 = vmatprep.subr.bf16.mxu0 0
        %827 = vmatpush1.bf16.msra.mxu0 %v769
        %828 = vmatprep.subr.bf16.mxu0 0
        %829 = vmatpush1.bf16.msra.mxu0 %v770
        %830 = vmatprep.subr.bf16.mxu0 0
        %831 = vmatpush1.bf16.msra.mxu0 %v771
        %832 = vmatprep.subr.bf16.mxu0 0
        %833 = vmatpush1.bf16.msra.mxu0 %v772
        %834 = vmatprep.subr.bf16.mxu0 0
        %835 = vmatpush1.bf16.msra.mxu0 %v773
        %836 = vmatprep.subr.bf16.mxu0 0
        %837 = vmatpush1.bf16.msra.mxu0 %v774
        %838 = vmatprep.subr.bf16.mxu0 0
        %839 = vmatpush1.bf16.msra.mxu0 %v775
        %840 = vmatprep.mubr.bf16.mxu0 %v641
        %841 = vmatmul.mubr.bf16.gmra.mrb[0].mxu0 %v640
        %v842 = vpop.f32.mrb[0].mxu0
        %v843 = vadd.f32 %v563, %v842
        %v844 = vpop.f32.mrb[0].mxu0
        %v845 = vpop.f32.mrb[0].mxu0
        %v846 = vadd.f32 %v568, %v845
        %v847 = vpop.f32.mrb[0].mxu0
        %848 = vmatprep.mubr.bf16.mxu0 %v644
        %849 = vmatmul.mubr.bf16.gmra.mrb[0].mxu0 %v643
        %v850 = vpop.f32.mrb[0].mxu0
        %v851 = vadd.f32 %v573, %v850
        %v852 = vpop.f32.mrb[0].mxu0
        %v853 = vpop.f32.mrb[0].mxu0
        %v854 = vadd.f32 %v578, %v853
        %v855 = vpop.f32.mrb[0].mxu0
        %856 = vmatprep.mubr.bf16.mxu0 %v647
        %857 = vmatmul.mubr.bf16.gmra.mrb[0].mxu0 %v646
        %v858 = vpop.f32.mrb[0].mxu0
        %v859 = vadd.f32 %v583, %v858
        %v860 = vpop.f32.mrb[0].mxu0
        %v861 = vpop.f32.mrb[0].mxu0
        %v862 = vadd.f32 %v588, %v861
        %v863 = vpop.f32.mrb[0].mxu0
        %864 = vmatprep.mubr.bf16.mxu0 %v650
        %865 = vmatmul.mubr.bf16.gmra.mrb[0].mxu0 %v649
        %v866 = vpop.f32.mrb[0].mxu0
        %v867 = vadd.f32 %v593, %v866
        %v868 = vpop.f32.mrb[0].mxu0
        %v869 = vpop.f32.mrb[0].mxu0
        %v870 = vadd.f32 %v598, %v869
        %v871 = vpop.f32.mrb[0].mxu0
        %872 = vdwg.mxu0
        %873 = vmatprep.subr.bf16.mxu0 0
        %874 = vmatpush1.bf16.msra.mxu0 %v776
        %875 = vmatprep.subr.bf16.mxu0 0
        %876 = vmatpush1.bf16.msra.mxu0 %v777
        %877 = vmatprep.subr.bf16.mxu0 0
        %878 = vmatpush1.bf16.msra.mxu0 %v778
        %879 = vmatprep.subr.bf16.mxu0 0
        %880 = vmatpush1.bf16.msra.mxu0 %v779
        %881 = vmatprep.subr.bf16.mxu0 0
        %882 = vmatpush1.bf16.msra.mxu0 %v780
        %883 = vmatprep.subr.bf16.mxu0 0
        %884 = vmatpush1.bf16.msra.mxu0 %v781
        %885 = vmatprep.subr.bf16.mxu0 0
        %886 = vmatpush1.bf16.msra.mxu0 %v782
        %887 = vmatprep.subr.bf16.mxu0 0
        %888 = vmatpush1.bf16.msra.mxu0 %v783
        %889 = vmatprep.subr.bf16.mxu0 0
        %890 = vmatpush1.bf16.msra.mxu0 0
        %891 = vmatprep.subr.bf16.mxu0 0
        %892 = vmatpush1.bf16.msra.mxu0 0
        %893 = vmatprep.subr.bf16.mxu0 0
        %894 = vmatpush1.bf16.msra.mxu0 0
        %895 = vmatprep.subr.bf16.mxu0 0
        %896 = vmatpush1.bf16.msra.mxu0 0
        %897 = vmatprep.subr.bf16.mxu0 0
        %898 = vmatpush1.bf16.msra.mxu0 0
        %899 = vmatprep.subr.bf16.mxu0 0
        %900 = vmatpush1.bf16.msra.mxu0 0
        %901 = vmatprep.subr.bf16.mxu0 0
        %902 = vmatpush1.bf16.msra.mxu0 0
        %903 = vmatprep.subr.bf16.mxu0 0
        %904 = vmatpush1.bf16.msra.mxu0 0
        %905 = vmatprep.mubr.bf16.mxu0 0
        %906 = vmatmul.mubr.bf16.gmra.mrb[0].mxu0 %v642
        %v907 = vpop.f32.mrb[0].mxu0
        %v908 = vadd.f32 %v843, %v907
        %v909 = vpop.f32.mrb[0].mxu0
        %v910 = vpop.f32.mrb[0].mxu0
        %v911 = vadd.f32 %v846, %v910
        %v912 = vpop.f32.mrb[0].mxu0
        %913 = vmatprep.mubr.bf16.mxu0 0
        %914 = vmatmul.mubr.bf16.gmra.mrb[0].mxu0 %v645
        %v915 = vpop.f32.mrb[0].mxu0
        %v916 = vadd.f32 %v851, %v915
        %v917 = vpop.f32.mrb[0].mxu0
        %v918 = vpop.f32.mrb[0].mxu0
        %v919 = vadd.f32 %v854, %v918
        %v920 = vpop.f32.mrb[0].mxu0
        %921 = vmatprep.mubr.bf16.mxu0 0
        %922 = vmatmul.mubr.bf16.gmra.mrb[0].mxu0 %v648
        %v923 = vpop.f32.mrb[0].mxu0
        %v924 = vadd.f32 %v859, %v923
        %v925 = vpop.f32.mrb[0].mxu0
        %v926 = vpop.f32.mrb[0].mxu0
        %v927 = vadd.f32 %v862, %v926
        %v928 = vpop.f32.mrb[0].mxu0
        %929 = vmatprep.mubr.bf16.mxu0 0
        %930 = vmatmul.mubr.bf16.gmra.mrb[0].mxu0 %v651
        %v931 = vpop.f32.mrb[0].mxu0
        %v932 = vadd.f32 %v867, %v931
        %v933 = vpop.f32.mrb[0].mxu0
        %v934 = vpop.f32.mrb[0].mxu0
        %v935 = vadd.f32 %v870, %v934
        %v936 = vpop.f32.mrb[0].mxu0
        %937 = vdwg.mxu0
        %v938 = vmax.f32 %v908, 0.0
        %v939 = vmax.f32 %v911, 0.0
        %v940 = vmax.f32 %v916, 0.0
        %v941 = vmax.f32 %v919, 0.0
        %v942 = vmax.f32 %v924, 0.0
        %v943 = vmax.f32 %v927, 0.0
        %v944 = vmax.f32 %v932, 0.0
        %v945 = vmax.f32 %v935, 0.0
        %947 = vset.pattern.permute.xlu0 0
        %948 = vperm.xlu0 %947, %v503
        %v949 = vpop.permute.xlu0 %948
        %952 = vset.pattern.permute.xlu0 0
        %953 = vperm.xlu0 %952, %v504
        %v954 = vpop.permute.xlu0 %953
        %957 = vset.pattern.permute.xlu0 0
        %958 = vperm.xlu0 %957, %v505
        %v959 = vpop.permute.xlu0 %958
        %962 = vset.pattern.permute.xlu0 0
        %963 = vperm.xlu0 %962, %v506
        %v964 = vpop.permute.xlu0 %963
        %967 = vset.pattern.permute.xlu0 0
        %968 = vperm.xlu0 %967, %v507
        %v969 = vpop.permute.xlu0 %968
        %972 = vset.pattern.permute.xlu0 0
        %973 = vperm.xlu0 %972, %v508
        %v974 = vpop.permute.xlu0 %973
        %977 = vset.pattern.permute.xlu0 0
        %978 = vperm.xlu0 %977, %v509
        %v979 = vpop.permute.xlu0 %978
        %982 = vset.pattern.permute.xlu0 0
        %983 = vperm.xlu0 %982, %v510
        %v984 = vpop.permute.xlu0 %983
        %v986 = vmul.f32 %v938, %v949
        %v987 = vmul.f32 %v939, %v954
        %v988 = vmul.f32 %v940, %v959
        %v989 = vmul.f32 %v941, %v964
        %v990 = vmul.f32 %v942, %v969
        %v991 = vmul.f32 %v943, %v974
        %v992 = vmul.f32 %v944, %v979
        %v993 = vmul.f32 %v945, %v984
        %v994 = vadd.f32 %v986, %v987
        %v995 = vadd.f32 %v994, %v988
        %v996 = vadd.f32 %v995, %v989
        %v997 = vadd.f32 %v996, %v990
        %v998 = vadd.f32 %v997, %v991
        %v999 = vadd.f32 %v998, %v992
        %v1000 = vadd.f32 %v999, %v993
        %v1001 = vrot.slane %v1000, 4
        %v1002 = vadd.f32 %v1000, %v1001
        %v1003 = vrot.slane %v1002, 2
        %v1004 = vadd.f32 %v1002, %v1003
        %v1005 = vrot.slane %v1004, 1
        %v1006 = vadd.f32 %v1004, %v1005
        %1008 = vset.pattern.permute.xlu0 0
        %1009 = vperm.xlu0 %1008, %v511
        %v1010 = vpop.permute.xlu0 %1009
        %v1012 = vlaneseq
        %v1013 = vshrl.u32 %v1012, 7
        %v1014 = vsub.s32 0, %v1013
        %v1015 = vrot.slane %v1010, %v1014
        %v1016 = vadd.f32 %v1006, %v1015
        %v1017 = vpack.c.bf16 %v1016, %v1016
        %vm1018 = vcmask 1040384
        %vm1019 = vsmask.f32 256
        %vm1020 = vmand %vm1018, %vm1019
        %v1021 = vld [vmem:[%s477] sm:$0x1]
        %v1022 = vsel %vm1020, %v1017, %v1021
        %1023 = vst [vmem:[%s477] sm:$0x1] %v1022
        %p1024 = scmp.lt.s32.totalorder %s22, 1
        %s1025 = scalar_select %p1024, %s22, 1
        %p1026 = scmp.lt.s32.totalorder %s23, 1
        %s1027 = scalar_select %p1026, %s23, 1
        %s1028 = smul.addr %s1025, 2
        %s1029 = sadd.s32 %s1027, %s1028
        %s1030 = scalar_lea.vmem %s5, %s1029
        // Predicated region
        $region82: #{vit_head_forward.1} parent=76 // pred_check
          %p1031 = pneg %p162
        $region83: #{vit_head_forward.1} parent=76 // pred_check_branch
          %1033 = sbr.rel (%p1031) target = $region85
        $region84: #{vit_head_forward.1} parent=76 // pred_region
          _
        $region85: #{vit_head_forward.1} parent=76 // pred_fallthru
          _
      $region77: #{vit_head_forward.1} parent=5 // pred_fallthru
        _
      %p1034 = scmp.le.s32.totalorder 2, %s13
      // Predicated region
      $region86: #{vit_head_forward.1} parent=5 // pred_check
        %p1035 = pneg %p1034
      $region87: #{vit_head_forward.1} parent=5 // pred_check_branch
        %1037 = sbr.rel (%p1035) target = $region89
      $region88: #{vit_head_forward.1} parent=5 // pred_region
        %s1038 = ssub.s32 %s13, 2
        // Predicated region
        $region90: #{vit_head_forward.1} parent=88 // pred_check
          %p1039 = pneg %p168
        $region91: #{vit_head_forward.1} parent=88 // pred_check_branch
          %1041 = sbr.rel (%p1039) target = $region93
        $region92: #{vit_head_forward.1} parent=88 // pred_region
          %p1042 = scmp.lt.s32.totalorder %s24, 1
          %s1043 = scalar_select %p1042, %s24, 1
          %p1044 = scmp.lt.s32.totalorder %s25, 1
          %s1045 = scalar_select %p1044, %s25, 1
          %s1046 = smul.addr %s1043, 2
          %s1047 = sadd.s32 %s1045, %s1046
          %s1048 = scalar_lea.vmem %s5, %s1047
        $region93: #{vit_head_forward.1} parent=88 // pred_fallthru
          _
      $region89: #{vit_head_forward.1} parent=5 // pred_fallthru
        _
    $region6: #{vit_head_forward.1} parent=1 // loop_footer
      %s17 = sadd.s32 1, %s13
    $region7: #{vit_head_forward.1} parent=1 // loop_footer_branch
      %12 = sbr.rel target = $region3
    $region8: #{vit_head_forward.1} parent=1 // loop_exit
      _

</llo_original>
